<compile_context>
chip_gen: v7x
topology: tpu7x:2x2x1
jax: 0.10.0
libtpu: 0.0.40
codegen_flags: <defaults>
</compile_context>

<pallas_src>
import functools
import math

import jax
import jax.numpy as jnp
from jax.experimental import pallas as pl
from jax.experimental.pallas import tpu as pltpu

_LANES = 128


def _pose_l1_kernel(pred_ref, gt_ref, out_ref, *, d, n, rot_weight, tile_rows):
    pid = pl.program_id(0)

    # Init resident accumulator (output block index is constant across grid).
    @pl.when(pid == 0)
    def _():
        out_ref[...] = jnp.zeros_like(out_ref)

    pred = pred_ref[...].astype(jnp.float32)
    gt = gt_ref[...].astype(jnp.float32)

    diff = pred - gt
    absd = jnp.abs(diff)
    # SmoothL1 per element (beta = 1.0, PyTorch default). Padded elements have
    # diff == 0 -> contribute exactly 0.
    smooth = jnp.where(absd < 1.0, 0.5 * diff * diff, absd - 0.5)

    # Fused weights: one pass does both means (divide by TRUE counts, not the
    # padded element count).
    trans_w = jnp.float32(1.0 / (n * (d - 1)))
    rot_w = jnp.float32(rot_weight / n)

    if _LANES % d == 0:
        # Rotation components sit at fixed lanes -> single (1,128) weight row,
        # identical for every sublane row, tile and grid step.
        col = jax.lax.broadcasted_iota(jnp.int32, (1, _LANES), 1)
        w = jnp.where(col % d == d - 1, rot_w, trans_w)  # (1, 128), broadcasts
    else:
        # General case: recover the flat element index and take it mod D.
        row = jax.lax.broadcasted_iota(jnp.int32, smooth.shape, 0)
        col = jax.lax.broadcasted_iota(jnp.int32, smooth.shape, 1)
        flat = (pid * tile_rows + row) * _LANES + col
        w = jnp.where(flat % d == d - 1, rot_w, trans_w)

    out_ref[...] += jnp.sum(smooth * w)


def pose_l1_loss(pose_est: jax.Array, pose_gt: jax.Array,
                 rot_weight: float = 5.0, tile_rows: int = 1024):
    """pose_est / pose_gt: (..., D) with D >= 2. Returns scalar f32 loss."""
    assert pose_est.shape == pose_gt.shape
    d = pose_est.shape[-1]
    assert d >= 2, "need at least 1 translation + 1 rotation component"
    n = math.prod(pose_est.shape[:-1])
    total = n * d

    # ---- lane-dense (R, 128) layout with zero-padded tail ----
    r = pl.cdiv(total, _LANES)
    if r <= tile_rows:
        tr = max(8, ((r + 7) // 8) * 8)      # single tile, sublane aligned
        r_pad = tr
    else:
        tr = tile_rows                        # multiple of 8 by construction
        r_pad = ((r + tr - 1) // tr) * tr
    num_tiles = r_pad // tr

    pad = r_pad * _LANES - total
    flat_p = pose_est.reshape(-1)
    flat_g = pose_gt.reshape(-1)
    if pad:
        flat_p = jnp.pad(flat_p, (0, pad))
        flat_g = jnp.pad(flat_g, (0, pad))
    p2 = flat_p.reshape(r_pad, _LANES)
    g2 = flat_g.reshape(r_pad, _LANES)

    kernel = functools.partial(
        _pose_l1_kernel, d=d, n=n, rot_weight=float(rot_weight), tile_rows=tr)

    out = pl.pallas_call(
        kernel,
        out_shape=jax.ShapeDtypeStruct((1, 1), jnp.float32),
        grid_spec=pl.GridSpec(
            grid=(num_tiles,),
            in_specs=[
                pl.BlockSpec((tr, _LANES), lambda i: (i, 0)),
                pl.BlockSpec((tr, _LANES), lambda i: (i, 0)),
            ],
            # Same block index every step -> output stays resident (accumulator).
            out_specs=pl.BlockSpec((1, 1), lambda i: (0, 0)),
        ),
        compiler_params=pltpu.CompilerParams(
            dimension_semantics=("arbitrary",)),
    )(p2, g2)
    return out[0, 0]


def pose_l1_loss_ref(pose_est, pose_gt, rot_weight=5.0):
    """Pure-JAX reference (mirrors PyTorch SmoothL1Loss mean)."""
    def smooth_l1_mean(a, b):
        d = a - b
        ad = jnp.abs(d)
        return jnp.mean(jnp.where(ad < 1.0, 0.5 * d * d, ad - 0.5))

    return smooth_l1_mean(pose_est[..., :-1], pose_gt[..., :-1]) + rot_weight * smooth_l1_mean(
        pose_est[..., -1], pose_gt[..., -1]
    )


if __name__ == "__main__":
    key = jax.random.PRNGKey(0)
    k1, k2 = jax.random.split(key)
    B, S, D = 2, 8, 4  # pose vector: 3 translation + 1 rotation component
    pose_est = jax.random.normal(k1, (B, S, D), dtype=jnp.float32) * 2.0
    pose_gt = jax.random.normal(k2, (B, S, D), dtype=jnp.float32) * 2.0

    loss = pose_l1_loss(pose_est, pose_gt, rot_weight=5.0)
    jax.block_until_ready(loss)

    ref = pose_l1_loss_ref(pose_est, pose_gt, rot_weight=5.0)
    assert jnp.allclose(loss, ref, rtol=1e-5, atol=1e-5), (loss, ref)
    print("KERNEL_OK")
</pallas_src>

<mosaic_0001>
module attributes {stable_mosaic.version = 11 : i64} {
  func.func @_pose_l1_kernel(%arg0: i32, %arg1: memref<8x128xf32, #tpu.memory_space<vmem>>, %arg2: memref<8x128xf32, #tpu.memory_space<vmem>>, %arg3: memref<1x1xf32, #tpu.memory_space<vmem>>) attributes {dimension_semantics = [#tpu.dimension_semantics<arbitrary>], iteration_bounds = array<i64: 1>, scalar_prefetch = 0 : i64, scratch_operands = 0 : i64, tpu.core_type = #tpu.core_type<tc>, window_params = [{transform_indices = @transform_0, window_bounds = array<i64: 8, 128>}, {transform_indices = @transform_1, window_bounds = array<i64: 8, 128>}, {pipeline_mode = #tpu.pipeline_mode<synchronous>, transform_indices = @transform_2, window_bounds = array<i64: 1, 1>}]} {
    %c0_i32 = arith.constant 0 : i32
    %0 = arith.cmpi eq, %arg0, %c0_i32 : i32
    %1 = arith.extui %0 : i1 to i32
    %c0_i32_0 = arith.constant 0 : i32
    %2 = arith.cmpi ne, %1, %c0_i32_0 : i32
    scf.if %2 {
      %cst_17 = arith.constant 0.000000e+00 : f32
      %47 = vector.broadcast %cst_17 : f32 to vector<1x1xf32>
      %c0_18 = arith.constant 0 : index
      %c0_19 = arith.constant 0 : index
      %48 = vector.load %arg3[%c0_18, %c0_19] : memref<1x1xf32, #tpu.memory_space<vmem>>, vector<1x1xf32>
      tpu.vector_store %arg3[%c0_18, %c0_19], %47 {strides = array<i32>} : memref<1x1xf32, #tpu.memory_space<vmem>>, vector<1x1xf32>,
    } else {
    }
    %c0 = arith.constant 0 : index
    %c0_1 = arith.constant 0 : index
    %3 = vector.load %arg1[%c0, %c0_1] : memref<8x128xf32, #tpu.memory_space<vmem>>, vector<8x128xf32>
    %c0_2 = arith.constant 0 : index
    %c0_3 = arith.constant 0 : index
    %4 = vector.load %arg2[%c0_2, %c0_3] : memref<8x128xf32, #tpu.memory_space<vmem>>, vector<8x128xf32>
    %5 = arith.subf %3, %4 : vector<8x128xf32>
    %6 = math.absf %5 : vector<8x128xf32>
    %cst = arith.constant 1.000000e+00 : f32
    %7 = vector.broadcast %cst : f32 to vector<8x128xf32>
    %8 = arith.cmpf olt, %6, %7 : vector<8x128xf32>
    %cst_4 = arith.constant 5.000000e-01 : f32
    %9 = vector.broadcast %cst_4 : f32 to vector<8x128xf32>
    %10 = arith.mulf %9, %5 : vector<8x128xf32>
    %11 = arith.mulf %10, %5 : vector<8x128xf32>
    %cst_5 = arith.constant 5.000000e-01 : f32
    %12 = vector.broadcast %cst_5 : f32 to vector<8x128xf32>
    %13 = arith.subf %6, %12 : vector<8x128xf32>
    %14 = arith.select %8, %11, %13 : vector<8x128xi1>, vector<8x128xf32>
    %15 = tpu.iota {dimensions = array<i32: 1>} : vector<1x128xi32>
    %c4_i32 = arith.constant 4 : i32
    %c0_i32_6 = arith.constant 0 : i32
    %16 = arith.cmpi eq, %c4_i32, %c0_i32_6 : i32
    %c1_i32 = arith.constant 1 : i32
    %17 = arith.select %16, %c1_i32, %c4_i32 : i32
    %18 = vector.broadcast %17 : i32 to vector<1x128xi32>
    %19 = arith.remsi %15, %18 : vector<1x128xi32>
    %c0_i32_7 = arith.constant 0 : i32
    %20 = vector.broadcast %c0_i32_7 : i32 to vector<1x128xi32>
    %21 = arith.cmpi ne, %19, %20 : vector<1x128xi32>
    %c0_i32_8 = arith.constant 0 : i32
    %22 = vector.broadcast %c0_i32_8 : i32 to vector<1x128xi32>
    %23 = arith.cmpi slt, %19, %22 : vector<1x128xi32>
    %c0_i32_9 = arith.constant 0 : i32
    %24 = arith.cmpi slt, %17, %c0_i32_9 : i32
    %25 = vector.broadcast %24 : i1 to vector<1x128xi1>
    %26 = vector.broadcast %25 : vector<1x128xi1> to vector<1x128xi1>
    %27 = arith.xori %23, %26 : vector<1x128xi1>
    %28 = arith.andi %27, %21 : vector<1x128xi1>
    %29 = vector.broadcast %17 : i32 to vector<1x128xi32>
    %30 = arith.addi %19, %29 : vector<1x128xi32>
    %31 = arith.select %28, %30, %19 : vector<1x128xi1>, vector<1x128xi32>
    %c3_i32 = arith.constant 3 : i32
    %32 = vector.broadcast %c3_i32 : i32 to vector<1x128xi32>
    %33 = arith.cmpi eq, %31, %32 : vector<1x128xi32>
    %cst_10 = arith.constant 3.125000e-01 : f32
    %cst_11 = arith.constant 0.020833334 : f32
    %34 = vector.broadcast %cst_10 : f32 to vector<1x128xf32>
    %35 = vector.broadcast %cst_11 : f32 to vector<1x128xf32>
    %36 = arith.select %33, %34, %35 : vector<1x128xi1>, vector<1x128xf32>
    %c0_12 = arith.constant 0 : index
    %c0_13 = arith.constant 0 : index
    %37 = vector.load %arg3[%c0_12, %c0_13] : memref<1x1xf32, #tpu.memory_space<vmem>>, vector<1x1xf32>
    %38 = vector.broadcast %36 : vector<1x128xf32> to vector<8x128xf32>
    %39 = arith.mulf %14, %38 : vector<8x128xf32>
    %40 = vector.shape_cast %39 : vector<8x128xf32> to vector<1x8x128xf32>
    %cst_14 = arith.constant dense<0.000000e+00> : vector<1xf32>
    %41 = vector.multi_reduction <add>, %40, %cst_14 [1, 2] : vector<1x8x128xf32> to vector<1xf32>
    %42 = vector.shape_cast %41 : vector<1xf32> to vector<1x1x1xf32>
    %43 = vector.extract %42[0, 0, 0] : f32 from vector<1x1x1xf32>
    %44 = vector.broadcast %43 : f32 to vector<1x1xf32>
    %45 = arith.addf %37, %44 : vector<1x1xf32>
    %c0_15 = arith.constant 0 : index
    %c0_16 = arith.constant 0 : index
    %46 = vector.load %arg3[%c0_15, %c0_16] : memref<1x1xf32, #tpu.memory_space<vmem>>, vector<1x1xf32>
    tpu.vector_store %arg3[%c0_15, %c0_16], %45 {strides = array<i32>} : memref<1x1xf32, #tpu.memory_space<vmem>>, vector<1x1xf32>,
    return
  }
  func.func @transform_0(%arg0: i32) -> (i32, i32) {
    %c0_i32 = arith.constant 0 : i32
    %c0_i32_0 = arith.constant 0 : i32
    return %arg0, %c0_i32 : i32, i32
  }
  func.func @transform_1(%arg0: i32) -> (i32, i32) {
    %c0_i32 = arith.constant 0 : i32
    %c0_i32_0 = arith.constant 0 : i32
    return %arg0, %c0_i32 : i32, i32
  }
  func.func @transform_2(%arg0: i32) -> (i32, i32) {
    %c0_i32 = arith.constant 0 : i32
    %c0_i32_0 = arith.constant 0 : i32
    %c0_i32_1 = arith.constant 0 : i32
    return %c0_i32, %c0_i32_0 : i32, i32
  }
}

</mosaic_0001>

<llo_original>
// kernel: tpu_custom_call.1
$region0: #{tpu_custom_call.1}
  #allocation0 [shape = 'u32[]', space=smem, size = 0x4, offset = 0x4, fixed_abs, tag = 'smem constant byte address 0x4 - core index']
  #allocation1 [shape = 'u32[144,128]{1,0:T(1,128)}', space=vmem, size = 0x12000, scoped, tag = 'internal scratch']
  %s0 = inlined_call_operand.hbm [shape: f32[8,128], index: 0, kind: input, shape index: {}]
  %s1 = inlined_call_operand.hbm [shape: f32[8,128], index: 1, kind: input, shape index: {}]
  %s2 = inlined_call_operand.hbm [shape: f32[1,1], index: 2, kind: output, shape index: {}]
  %s3 = sld [smem:[#allocation0]]
  $region30: #{tpu_custom_call.1} parent=0
    _
  %s5 = ssub.s32 1, %s3
  %s6 = scalar_select 0, %s5, %s3
  $region1: #{tpu_custom_call.1} parent=0
    #allocation2 [shape = 'u8[4096]{0}', space=vmem, size = 0x1000, scoped, tag = 'input window, operand 0, single buffered']
    #allocation3 [shape = 's32[1]{0}', space=sflag, size = 0x4, scoped, tag = 'scoped memory for tpu_custom_call.1']
    #allocation4 [shape = 's32[1]{0}', space=sflag, size = 0x4, scoped, tag = 'scoped memory for tpu_custom_call.1']
    #allocation5 [shape = 'u8[4096]{0}', space=vmem, size = 0x1000, scoped, tag = 'input window, operand 1, single buffered']
    #allocation6 [shape = 's32[1]{0}', space=sflag, size = 0x4, scoped, tag = 'scoped memory for tpu_custom_call.1']
    #allocation7 [shape = 'u8[512]{0}', space=vmem, size = 0x400, scoped, tag = 'output window, operand 0, single buffered']
    %7 = vsyncpa [#allocation3], 0
    %8 = vsyncpa [#allocation6], 0
    %9 = vsyncpa [#allocation4], 0
    // Predicated region
    $region2: #{tpu_custom_call.1} parent=1 // pred_check
      _
    $region3: #{tpu_custom_call.1} parent=1 // pred_check_branch
      %11 = sbr.rel (0) target = $region5
    $region4: #{tpu_custom_call.1} parent=1 // pred_region
      %s13 = ssub.s32 128, 128
      %14 = vsyncadd [#allocation3], %s13
      %s16 = sshll.u32 [#allocation2], 4
      %s17 = int_to_ptr.vmem [resolvable:$true] %s16
      %19 = dma.hbm_to_vmem [thread:$0]  %s0, 128, %s17, [#allocation3]
    $region5: #{tpu_custom_call.1} parent=1 // pred_fallthru
      _
    // Predicated region
    $region6: #{tpu_custom_call.1} parent=1 // pred_check
      _
    $region7: #{tpu_custom_call.1} parent=1 // pred_check_branch
      %21 = sbr.rel (0) target = $region9
    $region8: #{tpu_custom_call.1} parent=1 // pred_region
      %s23 = ssub.s32 128, 128
      %24 = vsyncadd [#allocation6], %s23
      %s26 = sshll.u32 [#allocation5], 4
      %s27 = int_to_ptr.vmem [resolvable:$true] %s26
      %29 = dma.hbm_to_vmem [thread:$0]  %s1, 128, %s27, [#allocation6]
    $region9: #{tpu_custom_call.1} parent=1 // pred_fallthru
      _
    // Predicated region
    $region10: #{tpu_custom_call.1} parent=1 // pred_check
      _
    $region11: #{tpu_custom_call.1} parent=1 // pred_check_branch
      %31 = sbr.rel (0) target = $region13
    $region12: #{tpu_custom_call.1} parent=1 // pred_region
      %32 = dma.done [#allocation3], 128
    $region13: #{tpu_custom_call.1} parent=1 // pred_fallthru
      _
    // Predicated region
    $region14: #{tpu_custom_call.1} parent=1 // pred_check
      _
    $region15: #{tpu_custom_call.1} parent=1 // pred_check_branch
      %34 = sbr.rel (0) target = $region17
    $region16: #{tpu_custom_call.1} parent=1 // pred_region
      %35 = dma.done [#allocation6], 128
    $region17: #{tpu_custom_call.1} parent=1 // pred_fallthru
      _
    %p36 = scmp.eq.s32.totalorder 0, 0
    // Predicated region
    $region18: #{tpu_custom_call.1} parent=1 // pred_check
      %p37 = pneg %p36
    $region19: #{tpu_custom_call.1} parent=1 // pred_check_branch
      %39 = sbr.rel (%p37) target = $region21
    $region20: #{tpu_custom_call.1} parent=1 // pred_region
      %vm40 = vcmask 0
      %41 = vst.msk [vmem:[#allocation7] sm:$0x1] %vm40, 0.0
    $region21: #{tpu_custom_call.1} parent=1 // pred_fallthru
      _
    %v42 = vld [vmem:[#allocation2] sm:$0xff]
    %v43 = vld [vmem:[#allocation5] sm:$0xff]
    %v44 = vsub.f32 %v42, %v43
    %v45 = vand.u32 2147483647, %v44
    %vm46 = vcmp.lt.f32.partialorder %v45, 1.0
    %v47 = vmul.f32 %v44, 0.5
    %v48 = vmul.f32 %v47, %v44
    %v49 = vsub.f32 %v45, 0.5
    %v50 = vsel %vm46, %v48, %v49
    %v51 = vlaneseq
    %v52 = vand.u32 %v51, 127
    %vm53 = vcmp.lt.s32.totalorder %v52, 0
    %v54 = vsub.s32 0, %v52
    %v55 = vsel %vm53, %v54, %v52
    %v56 = vshrl.u32 %v55, 2
    %v57 = vand.u32 %v55, 3
    %v58 = vsub.s32 0, %v57
    %v59 = vsel %vm53, %v58, %v57
    %vm60 = vcmp.ne.s32.totalorder %v59, 0
    %vm61 = vcmp.lt.s32.totalorder %v59, 0
    %vm62 = vmand %vm61, %vm60
    %v63 = vadd.s32 %v59, 4
    %v64 = vsel %vm62, %v63, %v59
    %vm65 = vcmp.eq.s32.totalorder %v64, 3
    %v66 = vsel %vm65, 0.3125, 0.020833334
    %v67 = vld [vmem:[#allocation7] sm:$0x1]
    %v68 = vmul.f32 %v50, %v66
    %69 = vadd.xlane.f32.xlu0 %v68
    %v70 = vpop.xlane.xlu0 %69
    %v71 = vrot.slane %v70, 4
    %v72 = vadd.f32 %v70, %v71
    %v73 = vrot.slane %v72, 2
    %v74 = vadd.f32 %v72, %v73
    %v75 = vrot.slane %v74, 1
    %v76 = vadd.f32 %v74, %v75
    %s77 = vtos %v76
    %v78 = vstv %s77
    %v79 = vadd.f32 %v67, %v78
    %vm80 = vcmask 0
    %81 = vst.msk [vmem:[#allocation7] sm:$0x1] %vm80, %v79
    // Predicated region
    $region22: #{tpu_custom_call.1} parent=1 // pred_check
      _
    $region23: #{tpu_custom_call.1} parent=1 // pred_check_branch
      %83 = sbr.rel (0) target = $region25
    $region24: #{tpu_custom_call.1} parent=1 // pred_region
      %s85 = ssub.s32 16, 16
      %86 = vsyncadd [#allocation4], %s85
      %s88 = sshll.u32 [#allocation7], 4
      %s89 = int_to_ptr.vmem [resolvable:$true] %s88
      %91 = dma.vmem_to_hbm [thread:$0]  %s89, 16, %s2, [#allocation4]
    $region25: #{tpu_custom_call.1} parent=1 // pred_fallthru
      _
    // Predicated region
    $region26: #{tpu_custom_call.1} parent=1 // pred_check
      _
    $region27: #{tpu_custom_call.1} parent=1 // pred_check_branch
      %93 = sbr.rel (0) target = $region29
    $region28: #{tpu_custom_call.1} parent=1 // pred_region
      %94 = dma.done [#allocation4], 16
    $region29: #{tpu_custom_call.1} parent=1 // pred_fallthru
      _
    %95 = vsyncpa [#allocation3], 1
    %96 = vsyncpa [#allocation6], 1
    %97 = vsyncpa [#allocation4], 1

</llo_original>
